<compile_context>
chip_gen: v7x
topology: tpu7x:2x2x1
jax: 0.10.0
libtpu: 0.0.40
codegen_flags: <defaults>
</compile_context>

<pallas_src>
import functools
import math

import jax
import jax.numpy as jnp
from jax.experimental import pallas as pl
from jax.experimental.pallas import tpu as pltpu


# ---------------------------------------------------------------------------
# Static helpers (trace-time only)
# ---------------------------------------------------------------------------
def _interp_matrix(in_size, out_size):
    """(in_size, out_size) 1-D interpolation matrix matching torch bilinear upsample
    with align_corners=False (source index clamped at 0, neighbor clamped at edge)."""
    scale = in_size / out_size
    o = jnp.arange(out_size, dtype=jnp.float32)
    src = jnp.maximum((o + 0.5) * scale - 0.5, 0.0)
    i0 = jnp.floor(src).astype(jnp.int32)
    i1 = jnp.minimum(i0 + 1, in_size - 1)
    frac = src - i0.astype(jnp.float32)
    m = (jax.nn.one_hot(i0, in_size, dtype=jnp.float32) * (1.0 - frac)[:, None]
         + jax.nn.one_hot(i1, in_size, dtype=jnp.float32) * frac[:, None])
    return m.T  # (in_size, out_size)


def _row_taps(in_size, out_size):
    """Static (i0, i1, frac) per output row (large-spatial upsample fallback)."""
    scale = in_size / out_size
    taps = []
    for r in range(out_size):
        src = max((r + 0.5) * scale - 0.5, 0.0)
        i0 = int(math.floor(src))
        i1 = min(i0 + 1, in_size - 1)
        taps.append((i0, i1, float(src - i0)))
    return tuple(taps)


# ---------------------------------------------------------------------------
# Fused Pallas kernel
# ---------------------------------------------------------------------------
def _up_module_kernel(fu_ref, bp_ref, w_ref, b_ref, ups_ref, cmask_ref, o_ref,
                      slab_ref, aux_ref, *,
                      cup, w_in, h_out, w_out, ksize, dilation, pad, base,
                      row_taps, kron_upsample, fuse_taps, compute_dtype):
    cin = slab_ref.shape[0]
    hw = h_out * w_out
    slab_len = slab_ref.shape[1]
    co = pl.program_id(1)
    tap0 = base - pad * (w_out + 1)          # flat slab start of tap (kh=0, kw=0)

    def tap_patch(kh, kw):
        start = tap0 + (kh * w_out + kw) * dilation      # static Python int
        patch = slab_ref[:, start:start + hw]            # (cin, hw) contiguous slice
        lo = pad - kw * dilation
        hi = w_out + pad - kw * dilation
        if lo > 0 or hi < w_out:                         # kill width-edge wraparound
            patch = patch * cmask_ref[kw:kw + 1, :]
        return patch

    # ---- Build the zero-padded concat slab (and the stacked conv operand) once per
    #      image: only on the first cout tile; reused by the remaining co steps. ------
    @pl.when(co == 0)
    def _build():
        # Zero only pad header / footer; interior is fully overwritten below.
        if base > 0:
            slab_ref[:, 0:base] = jnp.zeros((cin, base), compute_dtype)
        tail = slab_len - (base + hw)
        if tail > 0:
            slab_ref[:, base + hw:] = jnp.zeros((cin, tail), compute_dtype)

        fu = fu_ref[0].astype(compute_dtype)             # (cup, h_in*w_in)
        if kron_upsample:
            # One lane-dense matmul against the Kronecker interpolation matrix.
            up = jnp.dot(fu, ups_ref[...], preferred_element_type=jnp.float32)
        else:
            # Large-spatial fallback: per-row height blend + width matmul.
            rows = []
            for i0, i1, frac in row_taps:
                r0 = fu[:, i0 * w_in:(i0 + 1) * w_in]
                if frac == 0.0:
                    blended = r0
                else:
                    r1 = fu[:, i1 * w_in:(i1 + 1) * w_in]
                    blended = ((1.0 - frac) * r0.astype(jnp.float32)
                               + frac * r1.astype(jnp.float32)).astype(compute_dtype)
                rows.append(jnp.dot(blended, ups_ref[...],
                                    preferred_element_type=jnp.float32))
            up = jnp.concatenate(rows, axis=1)            # (cup, hw)

        # Channel concat [upsample(from_up); before_pool], channels-first, flat HW.
        slab_ref[0:cup, base:base + hw] = up.astype(compute_dtype)
        slab_ref[cup:cin, base:base + hw] = bp_ref[0].astype(compute_dtype)

        if fuse_taps:
            # Stage all k*k taps into one (k*k*cin, hw) operand (masks applied once
            # per image, not per cout tile) so the conv is a single K=k*k*cin matmul.
            for kh in range(ksize):
                for kw in range(ksize):
                    t = kh * ksize + kw
                    aux_ref[t * cin:(t + 1) * cin, :] = tap_patch(kh, kw)

    # ---- Conv + bias + ReLU for this cout tile ---------------------------------------
    bias = b_ref[...].astype(jnp.float32)                 # (tile_co, 1)
    if fuse_taps:
        acc = jnp.dot(w_ref[...], aux_ref[...],
                      preferred_element_type=jnp.float32) + bias
        o_ref[0] = jnp.maximum(acc, 0.0).astype(o_ref.dtype)     # relu_type == 'relu'
    else:
        # Large-cin fallback: per-tap matmuls accumulated into a VMEM f32 scratch
        # (keeps vreg pressure bounded instead of carrying a live accumulator chain).
        aux_ref[...] = jnp.broadcast_to(bias, aux_ref.shape)
        for kh in range(ksize):
            for kw in range(ksize):
                wk = w_ref[kh * ksize + kw]                # (tile_co, cin)
                aux_ref[...] += jnp.dot(wk, tap_patch(kh, kw),
                                        preferred_element_type=jnp.float32)
        o_ref[0] = jnp.maximum(aux_ref[...], 0.0).astype(o_ref.dtype)


# ---------------------------------------------------------------------------
# Public forward (NCHW in / NCHW out, matching the PyTorch module)
# ---------------------------------------------------------------------------
def up_module_forward(params, before_pool, from_up, *, kernel_size=3, stride=1,
                      dilation=1, compute_dtype=jnp.bfloat16,
                      kron_hw_limit=2048, fused_k_limit=1024, cout_tile=128):
    """forward(before_pool, from_up): upsample(from_up) -> cat(dim=1) -> conv block."""
    assert stride == 1  # TODO(synk): strided conv block not exercised by UpModule defaults
    w = params["conv_w"]
    b = params["conv_b"]
    n, cbp, h_out, w_out = before_pool.shape
    n2, cup, h_in, w_in = from_up.shape
    assert n == n2 and h_out == 2 * h_in and w_out == 2 * w_in
    cout, cin_w, kh_, kw_ = w.shape
    cin = cup + cbp
    k2 = kernel_size * kernel_size
    assert cin_w == cin and kh_ == kernel_size and kw_ == kernel_size

    pad = dilation * (kernel_size - 1) // 2
    hw = h_out * w_out
    guard = pad * (w_out + 1)                 # pad elems needed before/after the image
    base = ((guard + 127) // 128) * 128       # 128-lane aligned offset of pixel (0,0)
    slab_len = base + hw + guard

    # Trace-time strategy gates (small shapes take the fully fused paths).
    kron_upsample = (h_in * w_in) <= kron_hw_limit
    fuse_taps = (k2 * cin) <= fused_k_limit
    tile_co = cout_tile if (cout > cout_tile and cout % cout_tile == 0) else cout
    n_co = cout // tile_co

    # Free row-major reshapes: flat H*W on the lane axis, channels on sublanes.
    fu2 = from_up.reshape(n, cup, h_in * w_in)
    bp2 = before_pool.reshape(n, cbp, hw)
    b2 = b.reshape(cout, 1).astype(jnp.float32)

    mw = _interp_matrix(w_in, w_out)
    if kron_upsample:
        mh = _interp_matrix(h_in, h_out)
        # U[ih*w_in+iw, oh*w_out+ow] = Mh[ih,oh] * Mw[iw,ow]  (separable bilinear).
        ups = jnp.einsum("ho,wp->hwop", mh, mw).reshape(h_in * w_in, hw)
        row_taps = ()
    else:
        # TODO(synk): for very large spatial dims the Kron matrix is too big; fall back
        # to the separable per-row pass.
        ups = mw
        row_taps = _row_taps(h_in, h_out)
    ups = ups.astype(compute_dtype)

    if fuse_taps:
        # (cout, k*k*cin) with K ordered (kh, kw, cin) to match the stacked operand.
        w2 = jnp.transpose(w, (0, 2, 3, 1)).reshape(cout, k2 * cin)
        w_block = (tile_co, k2 * cin)
        w_spec = pl.BlockSpec(w_block, lambda i, co: (co, 0))
        aux_spec = pltpu.VMEM((k2 * cin, hw), compute_dtype)      # stacked conv operand
        aux_block = (k2 * cin, hw); aux_dtype = compute_dtype
    else:
        w2 = jnp.transpose(w, (2, 3, 0, 1)).reshape(k2, cout, cin)
        w_block = (k2, tile_co, cin)
        w_spec = pl.BlockSpec(w_block, lambda i, co: (0, co, 0))
        aux_spec = pltpu.VMEM((tile_co, hw), jnp.float32)         # f32 accumulator
        aux_block = (tile_co, hw); aux_dtype = jnp.float32
    w2 = w2.astype(compute_dtype)

    # Per-kw column-validity masks (zero the width-edge wraparound of a flat tap slice).
    col = jnp.arange(hw, dtype=jnp.int32) % w_out
    cmask = jnp.stack(
        [jnp.logical_and(col >= pad - kw * dilation,
                         col < w_out + pad - kw * dilation)
         for kw in range(kernel_size)], axis=0).astype(compute_dtype)    # (k, hw)

    kernel = functools.partial(
        _up_module_kernel, cup=cup, w_in=w_in, h_out=h_out, w_out=w_out,
        ksize=kernel_size, dilation=dilation, pad=pad, base=base,
        row_taps=row_taps, kron_upsample=kron_upsample, fuse_taps=fuse_taps,
        compute_dtype=compute_dtype)

    # Explicit VMEM budget: double-buffered I/O blocks + persistent scratch, 2x
    # headroom, capped below v7x's 64 MiB physical VMEM (v5e default scoped is only
    # 16 MiB, so set it explicitly).
    def _nbytes(shape, dtype):
        size = 1
        for d in shape:
            size *= int(d)
        return size * jnp.dtype(dtype).itemsize

    io_block_bytes = (_nbytes((1, cup, h_in * w_in), from_up.dtype)
                      + _nbytes((1, cbp, hw), before_pool.dtype)
                      + _nbytes(w_block, compute_dtype)
                      + _nbytes((tile_co, 1), jnp.float32)
                      + _nbytes(ups.shape, compute_dtype)
                      + _nbytes((kernel_size, hw), compute_dtype)
                      + _nbytes((1, tile_co, hw), before_pool.dtype))
    scratch_bytes = (_nbytes((cin, slab_len), compute_dtype)
                     + _nbytes(aux_block, aux_dtype))
    vmem_limit = int(min(max(2 * (2 * io_block_bytes + scratch_bytes), 32 * 2 ** 20),
                         56 * 2 ** 20))

    out = pl.pallas_call(
        kernel,
        out_shape=jax.ShapeDtypeStruct((n, cout, hw), before_pool.dtype),
        grid=(n, n_co),
        in_specs=[
            pl.BlockSpec((1, cup, h_in * w_in), lambda i, co: (i, 0, 0)),
            pl.BlockSpec((1, cbp, hw), lambda i, co: (i, 0, 0)),
            w_spec,
            pl.BlockSpec((tile_co, 1), lambda i, co: (co, 0)),
            pl.BlockSpec(ups.shape, lambda i, co: (0, 0)),
            pl.BlockSpec((kernel_size, hw), lambda i, co: (0, 0)),
        ],
        out_specs=pl.BlockSpec((1, tile_co, hw), lambda i, co: (i, co, 0)),
        scratch_shapes=[pltpu.VMEM((cin, slab_len), compute_dtype), aux_spec],
        compiler_params=pltpu.CompilerParams(
            dimension_semantics=("parallel", "arbitrary"),
            vmem_limit_bytes=vmem_limit),
    )(fu2, bp2, w2, b2, ups, cmask)

    return out.reshape(n, cout, h_out, w_out)


# ---------------------------------------------------------------------------
# Parameter init (matches nn.Conv2d default init) + pure-JAX reference
# ---------------------------------------------------------------------------
def init_up_module_params(key, inplanes, outplanes, kernel_size):
    kw_key, kb_key = jax.random.split(key)
    fan_in = inplanes * kernel_size * kernel_size
    bound = 1.0 / math.sqrt(fan_in)
    w = jax.random.uniform(kw_key, (outplanes, inplanes, kernel_size, kernel_size),
                           jnp.float32, -bound, bound)
    b = jax.random.uniform(kb_key, (outplanes,), jnp.float32, -bound, bound)
    return {"conv_w": w, "conv_b": b}


def _reference_forward(params, before_pool, from_up, *, kernel_size=3, dilation=1):
    """Pure-XLA reference with identical semantics, used for a numeric self-check."""
    n, cup, h_in, w_in = from_up.shape
    h_out, w_out = 2 * h_in, 2 * w_in

    def src_idx(size_out, size_in):
        o = jnp.arange(size_out, dtype=jnp.float32)
        s = jnp.maximum((o + 0.5) * (size_in / size_out) - 0.5, 0.0)
        i0 = jnp.floor(s).astype(jnp.int32)
        i1 = jnp.minimum(i0 + 1, size_in - 1)
        return i0, i1, s - i0.astype(jnp.float32)

    i0h, i1h, fh = src_idx(h_out, h_in)
    i0w, i1w, fw = src_idx(w_out, w_in)
    x0 = jnp.take(from_up, i0h, axis=2)
    x1 = jnp.take(from_up, i1h, axis=2)
    x00 = jnp.take(x0, i0w, axis=3); x01 = jnp.take(x0, i1w, axis=3)
    x10 = jnp.take(x1, i0w, axis=3); x11 = jnp.take(x1, i1w, axis=3)
    fh_ = fh[None, None, :, None]
    fw_ = fw[None, None, None, :]
    up = (x00 * (1 - fw_) + x01 * fw_) * (1 - fh_) + (x10 * (1 - fw_) + x11 * fw_) * fh_

    x = jnp.concatenate([up, before_pool], axis=1)
    pad = dilation * (kernel_size - 1) // 2
    y = jax.lax.conv_general_dilated(
        x, params["conv_w"], window_strides=(1, 1),
        padding=((pad, pad), (pad, pad)), rhs_dilation=(dilation, dilation),
        dimension_numbers=("NCHW", "OIHW", "NCHW"),
        precision=jax.lax.Precision.HIGHEST)
    return jnp.maximum(y + params["conv_b"][None, :, None, None], 0.0)


if __name__ == "__main__":
    key = jax.random.PRNGKey(0)
    k1, k2, k3 = jax.random.split(key, 3)

    n, c_bp, h, w = 2, 4, 16, 16
    c_up = 4
    before_pool = jax.random.normal(k1, (n, c_bp, h, w), jnp.float32)
    from_up = jax.random.normal(k2, (n, c_up, h // 2, w // 2), jnp.float32)

    inplanes = c_up + c_bp            # channels after torch.cat((from_up, before_pool), 1)
    outplanes = 16
    params = init_up_module_params(k3, inplanes, outplanes, kernel_size=3)

    ref = _reference_forward(params, before_pool, from_up, kernel_size=3, dilation=1)

    # (a) f32 compute, Kronecker upsample + fused-K conv, 2 cout tiles (exercises the
    #     pl.when slab/operand reuse across cout grid steps).
    fwd_f32 = jax.jit(functools.partial(up_module_forward, kernel_size=3, stride=1,
                                        dilation=1, compute_dtype=jnp.float32,
                                        cout_tile=8))
    out = fwd_f32(params, before_pool, from_up)
    jax.block_until_ready(out)
    assert out.shape == (n, outplanes, h, w), out.shape
    err = float(jnp.max(jnp.abs(out - ref)))
    assert err < 5e-2, f"f32 fused path: max abs error vs reference: {err}"

    # (b) f32 compute, forcing the large-shape fallbacks (per-row upsample, per-tap conv
    #     accumulating into a VMEM f32 scratch).
    fwd_fb = jax.jit(functools.partial(up_module_forward, kernel_size=3, stride=1,
                                       dilation=1, compute_dtype=jnp.float32,
                                       kron_hw_limit=0, fused_k_limit=0))
    out_fb = fwd_fb(params, before_pool, from_up)
    jax.block_until_ready(out_fb)
    err_fb = float(jnp.max(jnp.abs(out_fb - ref)))
    assert err_fb < 5e-2, f"f32 fallback path: max abs error vs reference: {err_fb}"

    # (c) default bf16 compute (MXU-native operands, bf16 slab), f32 accumulation.
    #     Looser tolerance vs the f32 reference because of bf16 operand rounding.
    fwd_bf16 = jax.jit(functools.partial(up_module_forward, kernel_size=3, stride=1,
                                         dilation=1))
    out_bf = fwd_bf16(params, before_pool, from_up)
    jax.block_until_ready(out_bf)
    err_bf = float(jnp.max(jnp.abs(out_bf - ref)))
    assert err_bf < 1e-1, f"bf16 path: max abs error vs reference: {err_bf}"

    print("KERNEL_OK")
</pallas_src>

<mosaic_0001>
module attributes {stable_mosaic.version = 11 : i64} {
  func.func @_up_module_kernel(%arg0: i32, %arg1: i32, %arg2: memref<1x4x64xf32, #tpu.memory_space<vmem>>, %arg3: memref<1x4x256xf32, #tpu.memory_space<vmem>>, %arg4: memref<8x72xf32, #tpu.memory_space<vmem>>, %arg5: memref<8x1xf32, #tpu.memory_space<vmem>>, %arg6: memref<64x256xf32, #tpu.memory_space<vmem>>, %arg7: memref<3x256xf32, #tpu.memory_space<vmem>>, %arg8: memref<1x8x256xf32, #tpu.memory_space<vmem>>, %arg9: memref<8x401xf32, #tpu.memory_space<vmem>>, %arg10: memref<72x256xf32, #tpu.memory_space<vmem>>) attributes {dimension_semantics = [#tpu.dimension_semantics<parallel>, #tpu.dimension_semantics<arbitrary>], iteration_bounds = array<i64: 2, 2>, scalar_prefetch = 0 : i64, scratch_operands = 2 : i64, tpu.core_type = #tpu.core_type<tc>, window_params = [{transform_indices = @transform_0, window_bounds = array<i64: 1, 4, 64>}, {transform_indices = @transform_1, window_bounds = array<i64: 1, 4, 256>}, {transform_indices = @transform_2, window_bounds = array<i64: 8, 72>}, {transform_indices = @transform_3, window_bounds = array<i64: 8, 1>}, {pipeline_mode = #tpu.pipeline_mode<synchronous>, transform_indices = @transform_4, window_bounds = array<i64: 64, 256>}, {pipeline_mode = #tpu.pipeline_mode<synchronous>, transform_indices = @transform_5, window_bounds = array<i64: 3, 256>}, {transform_indices = @transform_6, window_bounds = array<i64: 1, 8, 256>}]} {
    %c0_i32 = arith.constant 0 : i32
    %0 = arith.cmpi eq, %arg1, %c0_i32 : i32
    %1 = arith.extui %0 : i1 to i32
    %c0_i32_0 = arith.constant 0 : i32
    %2 = arith.cmpi ne, %1, %c0_i32_0 : i32
    scf.if %2 {
      %cst_10 = arith.constant 0.000000e+00 : f32
      %14 = vector.broadcast %cst_10 : f32 to vector<8x128xf32>
      %c0_11 = arith.constant 0 : index
      %c0_12 = arith.constant 0 : index
      %15 = vector.load %arg9[%c0_11, %c0_12] : memref<8x401xf32, #tpu.memory_space<vmem>>, vector<8x128xf32>
      tpu.vector_store %arg9[%c0_11, %c0_12], %14 {strides = array<i32>} : memref<8x401xf32, #tpu.memory_space<vmem>>, vector<8x128xf32>,
      %cst_13 = arith.constant 0.000000e+00 : f32
      %16 = vector.broadcast %cst_13 : f32 to vector<8x17xf32>
      %c0_14 = arith.constant 0 : index
      %c384 = arith.constant 384 : index
      %17 = vector.load %arg9[%c0_14, %c384] : memref<8x401xf32, #tpu.memory_space<vmem>>, vector<8x17xf32>
      tpu.vector_store %arg9[%c0_14, %c384], %16 {strides = array<i32>} : memref<8x401xf32, #tpu.memory_space<vmem>>, vector<8x17xf32>,
      %c0_15 = arith.constant 0 : index
      %c0_16 = arith.constant 0 : index
      %c0_17 = arith.constant 0 : index
      %18 = vector.load %arg2[%c0_15, %c0_16, %c0_17] : memref<1x4x64xf32, #tpu.memory_space<vmem>>, vector<1x4x64xf32>
      %19 = vector.shape_cast %18 : vector<1x4x64xf32> to vector<4x64xf32>
      %c0_18 = arith.constant 0 : index
      %c0_19 = arith.constant 0 : index
      %20 = vector.load %arg6[%c0_18, %c0_19] : memref<64x256xf32, #tpu.memory_space<vmem>>, vector<64x256xf32>
      %cst_20 = arith.constant dense<0.000000e+00> : vector<4x256xf32>
      %21 = tpu.matmul %19, %20, %cst_20 {dimension_numbers = #tpu.dot_dimension_numbers<[1], [0], [0], [1], [0, 0, 1, 1], [], []>} : vector<4x64xf32>, vector<64x256xf32>, vector<4x256xf32> -> vector<4x256xf32>
      %c0_21 = arith.constant 0 : index
      %c128 = arith.constant 128 : index
      %22 = vector.load %arg9[%c0_21, %c128] : memref<8x401xf32, #tpu.memory_space<vmem>>, vector<4x256xf32>
      tpu.vector_store %arg9[%c0_21, %c128], %21 {strides = array<i32>} : memref<8x401xf32, #tpu.memory_space<vmem>>, vector<4x256xf32>,
      %c0_22 = arith.constant 0 : index
      %c0_23 = arith.constant 0 : index
      %c0_24 = arith.constant 0 : index
      %23 = vector.load %arg3[%c0_22, %c0_23, %c0_24] : memref<1x4x256xf32, #tpu.memory_space<vmem>>, vector<1x4x256xf32>
      %24 = vector.shape_cast %23 : vector<1x4x256xf32> to vector<4x256xf32>
      %c4 = arith.constant 4 : index
      %c128_25 = arith.constant 128 : index
      %25 = vector.load %arg9[%c4, %c128_25] : memref<8x401xf32, #tpu.memory_space<vmem>>, vector<4x256xf32>
      tpu.vector_store %arg9[%c4, %c128_25], %24 {strides = array<i32>} : memref<8x401xf32, #tpu.memory_space<vmem>>, vector<4x256xf32>,
      %c0_26 = arith.constant 0 : index
      %c111 = arith.constant 111 : index
      %26 = vector.load %arg9[%c0_26, %c111] : memref<8x401xf32, #tpu.memory_space<vmem>>, vector<8x256xf32>
      %c0_27 = arith.constant 0 : index
      %c0_28 = arith.constant 0 : index
      %27 = vector.load %arg7[%c0_27, %c0_28] : memref<3x256xf32, #tpu.memory_space<vmem>>, vector<1x256xf32>
      %28 = vector.broadcast %27 : vector<1x256xf32> to vector<8x256xf32>
      %29 = arith.mulf %26, %28 : vector<8x256xf32>
      %c0_29 = arith.constant 0 : index
      %c0_30 = arith.constant 0 : index
      %30 = vector.load %arg10[%c0_29, %c0_30] : memref<72x256xf32, #tpu.memory_space<vmem>>, vector<8x256xf32>
      tpu.vector_store %arg10[%c0_29, %c0_30], %29 {strides = array<i32>} : memref<72x256xf32, #tpu.memory_space<vmem>>, vector<8x256xf32>,
      %c0_31 = arith.constant 0 : index
      %c112 = arith.constant 112 : index
      %31 = vector.load %arg9[%c0_31, %c112] : memref<8x401xf32, #tpu.memory_space<vmem>>, vector<8x256xf32>
      %c8 = arith.constant 8 : index
      %c0_32 = arith.constant 0 : index
      %32 = vector.load %arg10[%c8, %c0_32] : memref<72x256xf32, #tpu.memory_space<vmem>>, vector<8x256xf32>
      tpu.vector_store %arg10[%c8, %c0_32], %31 {strides = array<i32>} : memref<72x256xf32, #tpu.memory_space<vmem>>, vector<8x256xf32>,
      %c0_33 = arith.constant 0 : index
      %c113 = arith.constant 113 : index
      %33 = vector.load %arg9[%c0_33, %c113] : memref<8x401xf32, #tpu.memory_space<vmem>>, vector<8x256xf32>
      %c2 = arith.constant 2 : index
      %c0_34 = arith.constant 0 : index
      %34 = vector.load %arg7[%c2, %c0_34] : memref<3x256xf32, #tpu.memory_space<vmem>>, vector<1x256xf32>
      %35 = vector.broadcast %34 : vector<1x256xf32> to vector<8x256xf32>
      %36 = arith.mulf %33, %35 : vector<8x256xf32>
      %c16 = arith.constant 16 : index
      %c0_35 = arith.constant 0 : index
      %37 = vector.load %arg10[%c16, %c0_35] : memref<72x256xf32, #tpu.memory_space<vmem>>, vector<8x256xf32>
      tpu.vector_store %arg10[%c16, %c0_35], %36 {strides = array<i32>} : memref<72x256xf32, #tpu.memory_space<vmem>>, vector<8x256xf32>,
      %c0_36 = arith.constant 0 : index
      %c127 = arith.constant 127 : index
      %38 = vector.load %arg9[%c0_36, %c127] : memref<8x401xf32, #tpu.memory_space<vmem>>, vector<8x256xf32>
      %c0_37 = arith.constant 0 : index
      %c0_38 = arith.constant 0 : index
      %39 = vector.load %arg7[%c0_37, %c0_38] : memref<3x256xf32, #tpu.memory_space<vmem>>, vector<1x256xf32>
      %40 = vector.broadcast %39 : vector<1x256xf32> to vector<8x256xf32>
      %41 = arith.mulf %38, %40 : vector<8x256xf32>
      %c24 = arith.constant 24 : index
      %c0_39 = arith.constant 0 : index
      %42 = vector.load %arg10[%c24, %c0_39] : memref<72x256xf32, #tpu.memory_space<vmem>>, vector<8x256xf32>
      tpu.vector_store %arg10[%c24, %c0_39], %41 {strides = array<i32>} : memref<72x256xf32, #tpu.memory_space<vmem>>, vector<8x256xf32>,
      %c0_40 = arith.constant 0 : index
      %c128_41 = arith.constant 128 : index
      %43 = vector.load %arg9[%c0_40, %c128_41] : memref<8x401xf32, #tpu.memory_space<vmem>>, vector<8x256xf32>
      %c32 = arith.constant 32 : index
      %c0_42 = arith.constant 0 : index
      %44 = vector.load %arg10[%c32, %c0_42] : memref<72x256xf32, #tpu.memory_space<vmem>>, vector<8x256xf32>
      tpu.vector_store %arg10[%c32, %c0_42], %43 {strides = array<i32>} : memref<72x256xf32, #tpu.memory_space<vmem>>, vector<8x256xf32>,
      %c0_43 = arith.constant 0 : index
      %c129 = arith.constant 129 : index
      %45 = vector.load %arg9[%c0_43, %c129] : memref<8x401xf32, #tpu.memory_space<vmem>>, vector<8x256xf32>
      %c2_44 = arith.constant 2 : index
      %c0_45 = arith.constant 0 : index
      %46 = vector.load %arg7[%c2_44, %c0_45] : memref<3x256xf32, #tpu.memory_space<vmem>>, vector<1x256xf32>
      %47 = vector.broadcast %46 : vector<1x256xf32> to vector<8x256xf32>
      %48 = arith.mulf %45, %47 : vector<8x256xf32>
      %c40 = arith.constant 40 : index
      %c0_46 = arith.constant 0 : index
      %49 = vector.load %arg10[%c40, %c0_46] : memref<72x256xf32, #tpu.memory_space<vmem>>, vector<8x256xf32>
      tpu.vector_store %arg10[%c40, %c0_46], %48 {strides = array<i32>} : memref<72x256xf32, #tpu.memory_space<vmem>>, vector<8x256xf32>,
      %c0_47 = arith.constant 0 : index
      %c143 = arith.constant 143 : index
      %50 = vector.load %arg9[%c0_47, %c143] : memref<8x401xf32, #tpu.memory_space<vmem>>, vector<8x256xf32>
      %c0_48 = arith.constant 0 : index
      %c0_49 = arith.constant 0 : index
      %51 = vector.load %arg7[%c0_48, %c0_49] : memref<3x256xf32, #tpu.memory_space<vmem>>, vector<1x256xf32>
      %52 = vector.broadcast %51 : vector<1x256xf32> to vector<8x256xf32>
      %53 = arith.mulf %50, %52 : vector<8x256xf32>
      %c48 = arith.constant 48 : index
      %c0_50 = arith.constant 0 : index
      %54 = vector.load %arg10[%c48, %c0_50] : memref<72x256xf32, #tpu.memory_space<vmem>>, vector<8x256xf32>
      tpu.vector_store %arg10[%c48, %c0_50], %53 {strides = array<i32>} : memref<72x256xf32, #tpu.memory_space<vmem>>, vector<8x256xf32>,
      %c0_51 = arith.constant 0 : index
      %c144 = arith.constant 144 : index
      %55 = vector.load %arg9[%c0_51, %c144] : memref<8x401xf32, #tpu.memory_space<vmem>>, vector<8x256xf32>
      %c56 = arith.constant 56 : index
      %c0_52 = arith.constant 0 : index
      %56 = vector.load %arg10[%c56, %c0_52] : memref<72x256xf32, #tpu.memory_space<vmem>>, vector<8x256xf32>
      tpu.vector_store %arg10[%c56, %c0_52], %55 {strides = array<i32>} : memref<72x256xf32, #tpu.memory_space<vmem>>, vector<8x256xf32>,
      %c0_53 = arith.constant 0 : index
      %c145 = arith.constant 145 : index
      %57 = vector.load %arg9[%c0_53, %c145] : memref<8x401xf32, #tpu.memory_space<vmem>>, vector<8x256xf32>
      %c2_54 = arith.constant 2 : index
      %c0_55 = arith.constant 0 : index
      %58 = vector.load %arg7[%c2_54, %c0_55] : memref<3x256xf32, #tpu.memory_space<vmem>>, vector<1x256xf32>
      %59 = vector.broadcast %58 : vector<1x256xf32> to vector<8x256xf32>
      %60 = arith.mulf %57, %59 : vector<8x256xf32>
      %c64 = arith.constant 64 : index
      %c0_56 = arith.constant 0 : index
      %61 = vector.load %arg10[%c64, %c0_56] : memref<72x256xf32, #tpu.memory_space<vmem>>, vector<8x256xf32>
      tpu.vector_store %arg10[%c64, %c0_56], %60 {strides = array<i32>} : memref<72x256xf32, #tpu.memory_space<vmem>>, vector<8x256xf32>,
    } else {
    }
    %c0 = arith.constant 0 : index
    %c0_1 = arith.constant 0 : index
    %3 = vector.load %arg5[%c0, %c0_1] : memref<8x1xf32, #tpu.memory_space<vmem>>, vector<8x1xf32>
    %c0_2 = arith.constant 0 : index
    %c0_3 = arith.constant 0 : index
    %4 = vector.load %arg4[%c0_2, %c0_3] : memref<8x72xf32, #tpu.memory_space<vmem>>, vector<8x72xf32>
    %c0_4 = arith.constant 0 : index
    %c0_5 = arith.constant 0 : index
    %5 = vector.load %arg10[%c0_4, %c0_5] : memref<72x256xf32, #tpu.memory_space<vmem>>, vector<72x256xf32>
    %cst = arith.constant dense<0.000000e+00> : vector<8x256xf32>
    %6 = tpu.matmul %4, %5, %cst {dimension_numbers = #tpu.dot_dimension_numbers<[1], [0], [0], [1], [0, 0, 1, 1], [], []>} : vector<8x72xf32>, vector<72x256xf32>, vector<8x256xf32> -> vector<8x256xf32>
    %7 = vector.broadcast %3 : vector<8x1xf32> to vector<8x256xf32>
    %8 = arith.addf %6, %7 : vector<8x256xf32>
    %cst_6 = arith.constant 0.000000e+00 : f32
    %9 = vector.broadcast %cst_6 : f32 to vector<8x256xf32>
    %10 = arith.maximumf %8, %9 : vector<8x256xf32>
    %c0_7 = arith.constant 0 : index
    %c0_8 = arith.constant 0 : index
    %c0_9 = arith.constant 0 : index
    %11 = vector.load %arg8[%c0_7, %c0_8, %c0_9] : memref<1x8x256xf32, #tpu.memory_space<vmem>>, vector<1x8x256xf32>
    %12 = vector.shape_cast %11 : vector<1x8x256xf32> to vector<8x256xf32>
    %13 = vector.shape_cast %10 : vector<8x256xf32> to vector<1x8x256xf32>
    tpu.vector_store %arg8[%c0_7, %c0_8, %c0_9], %13 {strides = array<i32>} : memref<1x8x256xf32, #tpu.memory_space<vmem>>, vector<1x8x256xf32>,
    return
  }
  func.func @transform_0(%arg0: i32, %arg1: i32) -> (i32, i32, i32) {
    %c0_i32 = arith.constant 0 : i32
    %c0_i32_0 = arith.constant 0 : i32
    %c0_i32_1 = arith.constant 0 : i32
    return %arg0, %c0_i32, %c0_i32_0 : i32, i32, i32
  }
  func.func @transform_1(%arg0: i32, %arg1: i32) -> (i32, i32, i32) {
    %c0_i32 = arith.constant 0 : i32
    %c0_i32_0 = arith.constant 0 : i32
    %c0_i32_1 = arith.constant 0 : i32
    return %arg0, %c0_i32, %c0_i32_0 : i32, i32, i32
  }
  func.func @transform_2(%arg0: i32, %arg1: i32) -> (i32, i32) {
    %c0_i32 = arith.constant 0 : i32
    %c0_i32_0 = arith.constant 0 : i32
    return %arg1, %c0_i32 : i32, i32
  }
  func.func @transform_3(%arg0: i32, %arg1: i32) -> (i32, i32) {
    %c0_i32 = arith.constant 0 : i32
    %c0_i32_0 = arith.constant 0 : i32
    return %arg1, %c0_i32 : i32, i32
  }
  func.func @transform_4(%arg0: i32, %arg1: i32) -> (i32, i32) {
    %c0_i32 = arith.constant 0 : i32
    %c0_i32_0 = arith.constant 0 : i32
    %c0_i32_1 = arith.constant 0 : i32
    return %c0_i32, %c0_i32_0 : i32, i32
  }
  func.func @transform_5(%arg0: i32, %arg1: i32) -> (i32, i32) {
    %c0_i32 = arith.constant 0 : i32
    %c0_i32_0 = arith.constant 0 : i32
    %c0_i32_1 = arith.constant 0 : i32
    return %c0_i32, %c0_i32_0 : i32, i32
  }
  func.func @transform_6(%arg0: i32, %arg1: i32) -> (i32, i32, i32) {
    %c0_i32 = arith.constant 0 : i32
    %c0_i32_0 = arith.constant 0 : i32
    return %arg0, %arg1, %c0_i32 : i32, i32, i32
  }
}

</mosaic_0001>

<llo_original>
// kernel: up_module_forward.1
$region0: #{up_module_forward.1}
  #allocation0 [shape = 'u32[]', space=smem, size = 0x4, offset = 0x4, fixed_abs, tag = 'smem constant byte address 0x4 - core index']
  #allocation1 [shape = 'u32[144,128]{1,0:T(1,128)}', space=vmem, size = 0x12000, scoped, tag = 'internal scratch']
  #allocation2 [shape = 'f32[8,401]{1,0:T(8,128)}', space=vmem, size = 0x4000, scoped, tag = 'scratch operand']
  #allocation3 [shape = 'f32[72,256]{1,0:T(8,128)}', space=vmem, size = 0x12000, scoped, tag = 'scratch operand']
  %s0 = inlined_call_operand.vmem [shape: f32[2,4,64], index: 0, kind: input, shape index: {}]
  %s1 = inlined_call_operand.vmem [shape: f32[2,4,256], index: 1, kind: input, shape index: {}]
  %s2 = inlined_call_operand.vmem [shape: f32[16,72], index: 2, kind: input, shape index: {}]
  %s3 = inlined_call_operand.vmem [shape: f32[16,1], index: 3, kind: input, shape index: {}]
  %s4 = inlined_call_operand.vmem [shape: f32[64,256], index: 4, kind: input, shape index: {}]
  %s5 = inlined_call_operand.vmem [shape: f32[3,256], index: 5, kind: input, shape index: {}]
  %s6 = inlined_call_operand.vmem [shape: f32[2,16,256], index: 6, kind: output, shape index: {}]
  %s7 = sld [smem:[#allocation0]]
  $region61: #{up_module_forward.1} parent=0
    _
  %s9 = ssub.s32 1, %s7
  %s10 = scalar_select 0, %s9, %s7
  loop: start=0, step=1, limit=6
  $region2: #{up_module_forward.1} parent=0 // loop_pre_header
    _
  $region3: #{up_module_forward.1} parent=0 // loop_header
    %s12 = sphi 0, %s16
    %p13 = scmp.ge.s32.totalorder %s12, 6
    %s19 = sphi 0, %s31
    %s20 = sphi 0, %s27
    %s21 = sphi 0, %s19
    %s22 = sphi 0, %s20
    %s23 = sphi 0, %s21
    %s24 = sphi 0, %s22
    %s34 = sphi 0, %s36
    %s37 = sphi 0, %s34
    %s38 = sphi 0, %s37
    %s54 = sphi 0, %s38
    %s60 = sphi 0, %s62
    %s63 = sphi 0, %s60
    %s64 = sphi 0, %s63
    %s80 = sphi 0, %s64
    %s86 = sphi 0, %s88
    %s89 = sphi 0, %s86
    %s90 = sphi 0, %s89
    %s106 = sphi 0, %s90
    %s112 = sphi 0, %s114
    %s115 = sphi 0, %s112
    %s116 = sphi 0, %s115
    %s132 = sphi 0, %s116
    %s136 = sphi 0, %s136
    %s138 = sphi 0, %s136
    %s139 = sphi 0, %s138
    %s153 = sphi 0, %s139
    %s157 = sphi 0, %s157
    %s159 = sphi 0, %s157
    %s160 = sphi 0, %s159
    %s174 = sphi 0, %s160
    %s182 = sphi 0, %s184
    %s185 = sphi 0, %s182
    %s186 = sphi 0, %s185
    %s202 = sphi 0, %s186
  $region4: #{up_module_forward.1} parent=0 // loop_header_branch
    %15 = sbr.rel (%p13) target = $region8
  $region5: #{up_module_forward.1} parent=0 // loop_body
    %s17 = ssub.s32 %s12, 1
    %s18 = ssub.s32 %s12, 2
    %s25 = sadd.s32 1, %s20
    %p26 = scmp.ge.s32.totalorder %s25, 2
    %s27 = scalar_select %p26, 0, %s25
    %s28 = sadd.s32 1, %s19
    %s29 = scalar_select %p26, %s28, %s19
    %p30 = scmp.ge.s32.totalorder %s29, 2
    %s31 = scalar_select %p30, 0, %s29
    %s32 = ssub.s32 %s19, %s31
    %p33 = scmp.eq.s32.totalorder %s32, 0
    %s35 = sadd.s32 %s34, 1
    %s36 = scalar_select %p33, %s34, %s35
    %p39 = pneg %p33
    %p40 = scmp.eq.s32.totalorder %s12, 3
    %p41 = por %p39, %p40
    %p42 = scmp.ne.s32.totalorder %s34, %s37
    %p43 = scmp.eq.s32.totalorder %s12, 0
    %p44 = por %p42, %p43
    %p45 = scmp.ne.s32.totalorder %s34, %s37
    %p46 = scmp.eq.s32.totalorder %s17, 3
    %p47 = por %p45, %p46
    %p48 = scmp.ne.s32.totalorder %s37, %s38
    %p49 = scmp.eq.s32.totalorder %s17, 0
    %p50 = por %p48, %p49
    %p51 = scmp.ne.s32.totalorder %s37, %s38
    %p52 = scmp.eq.s32.totalorder %s18, 3
    %p53 = por %p51, %p52
    %p55 = scmp.ne.s32.totalorder %s38, %s54
    %p56 = scmp.eq.s32.totalorder %s18, 0
    %p57 = por %p55, %p56
    %s58 = ssub.s32 %s19, %s31
    %p59 = scmp.eq.s32.totalorder %s58, 0
    %s61 = sadd.s32 %s60, 1
    %s62 = scalar_select %p59, %s60, %s61
    %p65 = pneg %p59
    %p66 = scmp.eq.s32.totalorder %s12, 3
    %p67 = por %p65, %p66
    %p68 = scmp.ne.s32.totalorder %s60, %s63
    %p69 = scmp.eq.s32.totalorder %s12, 0
    %p70 = por %p68, %p69
    %p71 = scmp.ne.s32.totalorder %s60, %s63
    %p72 = scmp.eq.s32.totalorder %s17, 3
    %p73 = por %p71, %p72
    %p74 = scmp.ne.s32.totalorder %s63, %s64
    %p75 = scmp.eq.s32.totalorder %s17, 0
    %p76 = por %p74, %p75
    %p77 = scmp.ne.s32.totalorder %s63, %s64
    %p78 = scmp.eq.s32.totalorder %s18, 3
    %p79 = por %p77, %p78
    %p81 = scmp.ne.s32.totalorder %s64, %s80
    %p82 = scmp.eq.s32.totalorder %s18, 0
    %p83 = por %p81, %p82
    %s84 = ssub.s32 %s20, %s27
    %p85 = scmp.eq.s32.totalorder %s84, 0
    %s87 = sadd.s32 %s86, 1
    %s88 = scalar_select %p85, %s86, %s87
    %p91 = pneg %p85
    %p92 = scmp.eq.s32.totalorder %s12, 3
    %p93 = por %p91, %p92
    %p94 = scmp.ne.s32.totalorder %s86, %s89
    %p95 = scmp.eq.s32.totalorder %s12, 0
    %p96 = por %p94, %p95
    %p97 = scmp.ne.s32.totalorder %s86, %s89
    %p98 = scmp.eq.s32.totalorder %s17, 3
    %p99 = por %p97, %p98
    %p100 = scmp.ne.s32.totalorder %s89, %s90
    %p101 = scmp.eq.s32.totalorder %s17, 0
    %p102 = por %p100, %p101
    %p103 = scmp.ne.s32.totalorder %s89, %s90
    %p104 = scmp.eq.s32.totalorder %s18, 3
    %p105 = por %p103, %p104
    %p107 = scmp.ne.s32.totalorder %s90, %s106
    %p108 = scmp.eq.s32.totalorder %s18, 0
    %p109 = por %p107, %p108
    %s110 = ssub.s32 %s20, %s27
    %p111 = scmp.eq.s32.totalorder %s110, 0
    %s113 = sadd.s32 %s112, 1
    %s114 = scalar_select %p111, %s112, %s113
    %p117 = pneg %p111
    %p118 = scmp.eq.s32.totalorder %s12, 3
    %p119 = por %p117, %p118
    %p120 = scmp.ne.s32.totalorder %s112, %s115
    %p121 = scmp.eq.s32.totalorder %s12, 0
    %p122 = por %p120, %p121
    %p123 = scmp.ne.s32.totalorder %s112, %s115
    %p124 = scmp.eq.s32.totalorder %s17, 3
    %p125 = por %p123, %p124
    %p126 = scmp.ne.s32.totalorder %s115, %s116
    %p127 = scmp.eq.s32.totalorder %s17, 0
    %p128 = por %p126, %p127
    %p129 = scmp.ne.s32.totalorder %s115, %s116
    %p130 = scmp.eq.s32.totalorder %s18, 3
    %p131 = por %p129, %p130
    %p133 = scmp.ne.s32.totalorder %s116, %s132
    %p134 = scmp.eq.s32.totalorder %s18, 0
    %p135 = por %p133, %p134
    %s137 = sadd.s32 %s136, 1
    %p140 = scmp.eq.s32.totalorder %s12, 3
    %p141 = scmp.ne.s32.totalorder %s136, %s138
    %p142 = scmp.eq.s32.totalorder %s12, 0
    %p143 = por %p141, %p142
    %p144 = scmp.ne.s32.totalorder %s136, %s138
    %p145 = scmp.eq.s32.totalorder %s17, 3
    %p146 = por %p144, %p145
    %p147 = scmp.ne.s32.totalorder %s138, %s139
    %p148 = scmp.eq.s32.totalorder %s17, 0
    %p149 = por %p147, %p148
    %p150 = scmp.ne.s32.totalorder %s138, %s139
    %p151 = scmp.eq.s32.totalorder %s18, 3
    %p152 = por %p150, %p151
    %p154 = scmp.ne.s32.totalorder %s139, %s153
    %p155 = scmp.eq.s32.totalorder %s18, 0
    %p156 = por %p154, %p155
    %s158 = sadd.s32 %s157, 1
    %p161 = scmp.eq.s32.totalorder %s12, 3
    %p162 = scmp.ne.s32.totalorder %s157, %s159
    %p163 = scmp.eq.s32.totalorder %s12, 0
    %p164 = por %p162, %p163
    %p165 = scmp.ne.s32.totalorder %s157, %s159
    %p166 = scmp.eq.s32.totalorder %s17, 3
    %p167 = por %p165, %p166
    %p168 = scmp.ne.s32.totalorder %s159, %s160
    %p169 = scmp.eq.s32.totalorder %s17, 0
    %p170 = por %p168, %p169
    %p171 = scmp.ne.s32.totalorder %s159, %s160
    %p172 = scmp.eq.s32.totalorder %s18, 3
    %p173 = por %p171, %p172
    %p175 = scmp.ne.s32.totalorder %s160, %s174
    %p176 = scmp.eq.s32.totalorder %s18, 0
    %p177 = por %p175, %p176
    %s178 = ssub.s32 %s19, %s31
    %s179 = ssub.s32 %s20, %s27
    %s180 = sor.u32 %s178, %s179
    %p181 = scmp.eq.s32.totalorder %s180, 0
    %s183 = sadd.s32 %s182, 1
    %s184 = scalar_select %p181, %s182, %s183
    %p187 = pneg %p181
    %p188 = scmp.eq.s32.totalorder %s12, 3
    %p189 = por %p187, %p188
    %p190 = scmp.ne.s32.totalorder %s182, %s185
    %p191 = scmp.eq.s32.totalorder %s12, 0
    %p192 = por %p190, %p191
    %p193 = scmp.ne.s32.totalorder %s182, %s185
    %p194 = scmp.eq.s32.totalorder %s17, 3
    %p195 = por %p193, %p194
    %p196 = scmp.ne.s32.totalorder %s185, %s186
    %p197 = scmp.eq.s32.totalorder %s17, 0
    %p198 = por %p196, %p197
    %p199 = scmp.ne.s32.totalorder %s185, %s186
    %p200 = scmp.eq.s32.totalorder %s18, 3
    %p201 = por %p199, %p200
    %p203 = scmp.ne.s32.totalorder %s186, %s202
    %p204 = scmp.eq.s32.totalorder %s18, 0
    %p205 = por %p203, %p204
    %p206 = scmp.le.s32.totalorder 1, %s12
    %p207 = scmp.lt.s32.totalorder %s12, 5
    %p208 = pnand %p206, %p207
    %p209 = pneg %p208
    // Predicated region
    $region9: #{up_module_forward.1} parent=5 // pred_check
      _
    $region10: #{up_module_forward.1} parent=5 // pred_check_branch
      %211 = sbr.rel (%p208) target = $region12
    $region11: #{up_module_forward.1} parent=5 // pred_region
      %s212 = ssub.s32 %s12, 1
      // Predicated region
      $region13: #{up_module_forward.1} parent=11 // pred_check
        %p213 = pneg %p149
      $region14: #{up_module_forward.1} parent=11 // pred_check_branch
        %215 = sbr.rel (%p213) target = $region16
      $region15: #{up_module_forward.1} parent=11 // pred_region
        _
      $region16: #{up_module_forward.1} parent=11 // pred_fallthru
        _
      // Predicated region
      $region17: #{up_module_forward.1} parent=11 // pred_check
        %p216 = pneg %p170
      $region18: #{up_module_forward.1} parent=11 // pred_check_branch
        %218 = sbr.rel (%p216) target = $region20
      $region19: #{up_module_forward.1} parent=11 // pred_region
        _
      $region20: #{up_module_forward.1} parent=11 // pred_fallthru
        _
    $region12: #{up_module_forward.1} parent=5 // pred_fallthru
      _
    %p219 = scmp.lt.s32.totalorder %s12, 4
    // Predicated region
    $region21: #{up_module_forward.1} parent=5 // pred_check
      %p220 = pneg %p219
    $region22: #{up_module_forward.1} parent=5 // pred_check_branch
      %222 = sbr.rel (%p220) target = $region24
    $region23: #{up_module_forward.1} parent=5 // pred_region
      // Predicated region
      $region25: #{up_module_forward.1} parent=23 // pred_check
        %p223 = pneg %p44
      $region26: #{up_module_forward.1} parent=23 // pred_check_branch
        %225 = sbr.rel (%p223) target = $region28
      $region27: #{up_module_forward.1} parent=23 // pred_region
        %p226 = scmp.lt.s32.totalorder %s19, 1
        %s227 = scalar_select %p226, %s19, 1
        %s228 = smul.addr %s227, 4
        %s229 = scalar_lea.vmem %s0, %s228
      $region28: #{up_module_forward.1} parent=23 // pred_fallthru
        _
      // Predicated region
      $region29: #{up_module_forward.1} parent=23 // pred_check
        %p230 = pneg %p70
      $region30: #{up_module_forward.1} parent=23 // pred_check_branch
        %232 = sbr.rel (%p230) target = $region32
      $region31: #{up_module_forward.1} parent=23 // pred_region
        %p233 = scmp.lt.s32.totalorder %s19, 1
        %s234 = scalar_select %p233, %s19, 1
        %s235 = smul.addr %s234, 2
        %s236 = smul.addr %s235, 4
        %s237 = scalar_lea.vmem %s1, %s236
      $region32: #{up_module_forward.1} parent=23 // pred_fallthru
        _
      // Predicated region
      $region33: #{up_module_forward.1} parent=23 // pred_check
        %p238 = pneg %p96
      $region34: #{up_module_forward.1} parent=23 // pred_check_branch
        %240 = sbr.rel (%p238) target = $region36
      $region35: #{up_module_forward.1} parent=23 // pred_region
        %p241 = scmp.lt.s32.totalorder %s20, 1
        %s242 = scalar_select %p241, %s20, 1
        %s243 = smul.addr %s242, 8
        %s244 = scalar_lea.vmem %s2, %s243
      $region36: #{up_module_forward.1} parent=23 // pred_fallthru
        _
      // Predicated region
      $region37: #{up_module_forward.1} parent=23 // pred_check
        %p245 = pneg %p122
      $region38: #{up_module_forward.1} parent=23 // pred_check_branch
        %247 = sbr.rel (%p245) target = $region40
      $region39: #{up_module_forward.1} parent=23 // pred_region
        %p248 = scmp.lt.s32.totalorder %s20, 1
        %s249 = scalar_select %p248, %s20, 1
        %s250 = smul.addr %s249, 8
        %s251 = scalar_lea.vmem %s3, %s250
      $region40: #{up_module_forward.1} parent=23 // pred_fallthru
        _
    $region24: #{up_module_forward.1} parent=5 // pred_fallthru
      _
    %p252 = scmp.le.s32.totalorder 1, %s12
    %p253 = scmp.lt.s32.totalorder %s12, 5
    %p254 = pnand %p252, %p253
    %p255 = pneg %p254
    // Predicated region
    $region41: #{up_module_forward.1} parent=5 // pred_check
      _
    $region42: #{up_module_forward.1} parent=5 // pred_check_branch
      %257 = sbr.rel (%p254) target = $region44
    $region43: #{up_module_forward.1} parent=5 // pred_region
      %s258 = ssub.s32 %s12, 1
      %p259 = scmp.lt.s32.totalorder %s21, 1
      %s260 = scalar_select %p259, %s21, 1
      %s261 = smul.addr %s260, 4
      %s262 = scalar_lea.vmem %s0, %s261
      %p263 = pneg %p50
      %p264 = pneg %p47
      %p265 = scmp.lt.s32.totalorder %s21, 1
      %s266 = scalar_select %p265, %s21, 1
      %s267 = smul.addr %s266, 2
      %s268 = smul.addr %s267, 4
      %s269 = scalar_lea.vmem %s1, %s268
      %p270 = pneg %p76
      %p271 = pneg %p73
      %p272 = scmp.lt.s32.totalorder %s22, 1
      %s273 = scalar_select %p272, %s22, 1
      %s274 = smul.addr %s273, 8
      %s275 = scalar_lea.vmem %s2, %s274
      %p276 = pneg %p102
      %p277 = pneg %p99
      %p278 = scmp.lt.s32.totalorder %s22, 1
      %s279 = scalar_select %p278, %s22, 1
      %s280 = smul.addr %s279, 8
      %s281 = scalar_lea.vmem %s3, %s280
      %p282 = pneg %p128
      %p283 = pneg %p125
      %p284 = pneg %p149
      %p285 = pneg %p146
      %p286 = pneg %p170
      %p287 = pneg %p167
      %p288 = pneg %p198
      %p289 = pneg %p195
      %p290 = scmp.lt.s32.totalorder %s21, 1
      %s291 = scalar_select %p290, %s21, 1
      %p292 = scmp.lt.s32.totalorder %s22, 1
      %s293 = scalar_select %p292, %s22, 1
      %s294 = smul.addr %s293, 2
      %s295 = smul.addr %s291, 4
      %s296 = sadd.s32 %s294, %s295
      %s297 = smul.addr %s296, 8
      %s298 = scalar_lea.vmem %s6, %s297
      %p299 = scmp.lt.s32.totalorder %s21, 1
      %s300 = scalar_select %p299, %s21, 1
      %s301 = smul.addr %s300, 4
      %s302 = scalar_lea.vmem %s0, %s301
      %p303 = scmp.lt.s32.totalorder %s21, 1
      %s304 = scalar_select %p303, %s21, 1
      %s305 = smul.addr %s304, 2
      %s306 = smul.addr %s305, 4
      %s307 = scalar_lea.vmem %s1, %s306
      %p308 = scmp.lt.s32.totalorder %s22, 1
      %s309 = scalar_select %p308, %s22, 1
      %s310 = smul.addr %s309, 8
      %s311 = scalar_lea.vmem %s2, %s310
      %p312 = scmp.lt.s32.totalorder %s22, 1
      %s313 = scalar_select %p312, %s22, 1
      %s314 = smul.addr %s313, 8
      %s315 = scalar_lea.vmem %s3, %s314
      %p316 = scmp.lt.s32.totalorder %s21, 1
      %s317 = scalar_select %p316, %s21, 1
      %p318 = scmp.lt.s32.totalorder %s22, 1
      %s319 = scalar_select %p318, %s22, 1
      %s320 = smul.addr %s319, 2
      %s321 = smul.addr %s317, 4
      %s322 = sadd.s32 %s320, %s321
      %s323 = smul.addr %s322, 8
      %s324 = scalar_lea.vmem %s6, %s323
      %p325 = scmp.eq.s32.totalorder %s22, 0
      // Predicated region
      $region45: #{up_module_forward.1} parent=43 // pred_check
        %p326 = pneg %p325
      $region46: #{up_module_forward.1} parent=43 // pred_check_branch
        %328 = sbr.rel (%p326) target = $region48
      $region47: #{up_module_forward.1} parent=43 // pred_region
        %329 = vst [vmem:[#allocation2] sm:$0xff] 0.0
        %vm330 = vcmask 138240
        %331 = vst.msk [vmem:[#allocation2 + $0x18] sm:$0xff] %vm330, 0.0
        %v332 = vld [vmem:[%s302] sm:$0xf]
        %v333 = vld [vmem:[%s4] sm:$0xff]
        %v334 = vld [vmem:[%s4 + $0x8] sm:$0xff]
        %v335 = vld [vmem:[%s4 + $0x10] sm:$0xff]
        %v336 = vld [vmem:[%s4 + $0x18] sm:$0xff]
        %v337 = vld [vmem:[%s4 + $0x20] sm:$0xff]
        %v338 = vld [vmem:[%s4 + $0x28] sm:$0xff]
        %v339 = vld [vmem:[%s4 + $0x30] sm:$0xff]
        %v340 = vld [vmem:[%s4 + $0x38] sm:$0xff]
        %v341 = vld [vmem:[%s4 + $0x40] sm:$0xff]
        %v342 = vld [vmem:[%s4 + $0x48] sm:$0xff]
        %v343 = vld [vmem:[%s4 + $0x50] sm:$0xff]
        %v344 = vld [vmem:[%s4 + $0x58] sm:$0xff]
        %v345 = vld [vmem:[%s4 + $0x60] sm:$0xff]
        %v346 = vld [vmem:[%s4 + $0x68] sm:$0xff]
        %v347 = vld [vmem:[%s4 + $0x70] sm:$0xff]
        %v348 = vld [vmem:[%s4 + $0x78] sm:$0xff]
        %vm349 = vcmask 523264
        %v351 = vsel %vm349, %v332, 0
        %353 = vmatprep.subr.mxu0 %v334
        %354 = vmatpush1.msra.mxu0 %v333
        %355 = vmatprep.subr.mxu0 %v336
        %356 = vmatpush1.msra.mxu0 %v335
        %357 = vmatprep.subr.mxu0 %v338
        %358 = vmatpush1.msra.mxu0 %v337
        %359 = vmatprep.subr.mxu0 %v340
        %360 = vmatpush1.msra.mxu0 %v339
        %361 = vmatprep.subr.mxu0 %v342
        %362 = vmatpush1.msra.mxu0 %v341
        %363 = vmatprep.subr.mxu0 %v344
        %364 = vmatpush1.msra.mxu0 %v343
        %365 = vmatprep.subr.mxu0 %v346
        %366 = vmatpush1.msra.mxu0 %v345
        %367 = vmatprep.subr.mxu0 %v348
        %368 = vmatpush1.msra.mxu0 %v347
        %369 = vmatprep.subr.mxu0 0.0
        %370 = vmatpush1.msra.mxu0 0.0
        %371 = vmatprep.subr.mxu0 0.0
        %372 = vmatpush1.msra.mxu0 0.0
        %373 = vmatprep.subr.mxu0 0.0
        %374 = vmatpush1.msra.mxu0 0.0
        %375 = vmatprep.subr.mxu0 0.0
        %376 = vmatpush1.msra.mxu0 0.0
        %377 = vmatprep.subr.mxu0 0.0
        %378 = vmatpush1.msra.mxu0 0.0
        %379 = vmatprep.subr.mxu0 0.0
        %380 = vmatpush1.msra.mxu0 0.0
        %381 = vmatprep.subr.mxu0 0.0
        %382 = vmatpush1.msra.mxu0 0.0
        %383 = vmatprep.subr.mxu0 0.0
        %384 = vmatpush1.msra.mxu0 0.0
        %385 = vmatprep.subr.mxu0 0.0
        %386 = vmatpush1.msra.mxu0 0.0
        %387 = vmatprep.subr.mxu0 0.0
        %388 = vmatpush1.msra.mxu0 0.0
        %389 = vmatprep.subr.mxu0 0.0
        %390 = vmatpush1.msra.mxu0 0.0
        %391 = vmatprep.subr.mxu0 0.0
        %392 = vmatpush1.msra.mxu0 0.0
        %393 = vmatprep.subr.mxu0 0.0
        %394 = vmatpush1.msra.mxu0 0.0
        %395 = vmatprep.subr.mxu0 0.0
        %396 = vmatpush1.msra.mxu0 0.0
        %397 = vmatprep.subr.mxu0 0.0
        %398 = vmatpush1.msra.mxu0 0.0
        %399 = vmatprep.subr.mxu0 0.0
        %400 = vmatpush1.msra.mxu0 0.0
        %401 = vmatprep.subr.mxu0 0.0
        %402 = vmatpush1.msra.mxu0 0.0
        %403 = vmatprep.subr.mxu0 0.0
        %404 = vmatpush1.msra.mxu0 0.0
        %405 = vmatprep.subr.mxu0 0.0
        %406 = vmatpush1.msra.mxu0 0.0
        %407 = vmatprep.subr.mxu0 0.0
        %408 = vmatpush1.msra.mxu0 0.0
        %409 = vmatprep.subr.mxu0 0.0
        %410 = vmatpush1.msra.mxu0 0.0
        %411 = vmatprep.subr.mxu0 0.0
        %412 = vmatpush1.msra.mxu0 0.0
        %413 = vmatprep.subr.mxu0 0.0
        %414 = vmatpush1.msra.mxu0 0.0
        %415 = vmatprep.subr.mxu0 0.0
        %416 = vmatpush1.msra.mxu0 0.0
        %417 = vmatprep.mubr.f32.mxu0 0.0
        %418 = vmatmul.mubr.f32.gmra.mrb[0].mxu0 %v351
        %v419 = vpop.f32.mrb[0].mxu0
        %v420 = vadd.f32 0.0, %v419
        %v421 = vpop.f32.mrb[0].mxu0
        %v422 = vadd.f32 0.0, %v421
        %423 = vdwg.mxu0
        %424 = vst [vmem:[#allocation2 + $0x8] sm:$0xf] %v420
        %425 = vst [vmem:[#allocation2 + $0x10] sm:$0xf] %v422
        %v426 = vld [vmem:[%s307] sm:$0xff]
        %v428 = vcombine.low %v426, %v426
        %430 = vst [vmem:[#allocation2 + $0x8] sm:$0xf0] %v428
        %431 = vst [vmem:[#allocation2 + $0x10] sm:$0xf0] %v426
        %v432 = vld [vmem:[#allocation2] sm:$0xff]
        %v433 = vld [vmem:[#allocation2 + $0x8] sm:$0xff]
        %v434 = vld [vmem:[#allocation2 + $0x10] sm:$0xff]
        %v435 = vld [vmem:[%s5] ss:$4 sm:$0x3]
        %v437 = vlaneseq
        %v438 = vshrl.u32 %v437, 7
        %v439 = vsub.s32 0, %v438
        %v440 = vrot.slane %v435, %v439
        %v441 = vlaneseq
        %v442 = vshrl.u32 %v441, 7
        %v443 = vsub.s32 1, %v442
        %v444 = vrot.slane %v435, %v443
        %445 = vrot.lane.b32.xlu0 %v440, 111
        %v446 = vpop.permute.xlu0 %445
        %447 = vrot.lane.b32.xlu0 %v444, 111
        %v448 = vpop.permute.xlu0 %447
        %vm449 = vcmask 908288
        %v450 = vsel %vm449, %v446, %v448
        %v454 = vmul.f32 %v432, %v446
        %v455 = vmul.f32 %v433, %v450
        %v456 = vmul.f32 %v434, %v448
        %460 = vrot.lane.b32.xlu0 %v454, 17
        %v461 = vpop.permute.xlu0 %460
        %462 = vrot.lane.b32.xlu0 %v455, 17
        %v463 = vpop.permute.xlu0 %462
        %464 = vrot.lane.b32.xlu0 %v456, 17
        %v465 = vpop.permute.xlu0 %464
        %v466 = vsel %vm330, %v461, %v463
        %v467 = vsel %vm330, %v463, %v465
        %470 = vst [vmem:[#allocation3] sm:$0xff] %v466
        %471 = vst [vmem:[#allocation3 + $0x8] sm:$0xff] %v467
        %v472 = vld [vmem:[#allocation2] sm:$0xff]
        %v473 = vld [vmem:[#allocation2 + $0x8] sm:$0xff]
        %v474 = vld [vmem:[#allocation2 + $0x10] sm:$0xff]
        %478 = vrot.lane.b32.xlu0 %v472, 16
        %v479 = vpop.permute.xlu0 %478
        %480 = vrot.lane.b32.xlu0 %v473, 16
        %v481 = vpop.permute.xlu0 %480
        %482 = vrot.lane.b32.xlu0 %v474, 16
        %v483 = vpop.permute.xlu0 %482
        %vm484 = vcmask 130048
        %v485 = vsel %vm484, %v479, %v481
        %v486 = vsel %vm484, %v481, %v483
        %489 = vst [vmem:[#allocation3 + $0x10] sm:$0xff] %v485
        %490 = vst [vmem:[#allocation3 + $0x18] sm:$0xff] %v486
        %v491 = vld [vmem:[#allocation2] sm:$0xff]
        %v492 = vld [vmem:[#allocation2 + $0x8] sm:$0xff]
        %v493 = vld [vmem:[#allocation2 + $0x10] sm:$0xff]
        %s494 = scalar_lea.vmem %s5, 2
        %v495 = vld [vmem:[%s494] ss:$4 sm:$0x3]
        %v497 = vlaneseq
        %v498 = vshrl.u32 %v497, 7
        %v499 = vsub.s32 0, %v498
        %v500 = vrot.slane %v495, %v499
        %v501 = vlaneseq
        %v502 = vshrl.u32 %v501, 7
        %v503 = vsub.s32 1, %v502
        %v504 = vrot.slane %v495, %v503
        %505 = vrot.lane.b32.xlu0 %v500, 113
        %v506 = vpop.permute.xlu0 %505
        %507 = vrot.lane.b32.xlu0 %v504, 113
        %v508 = vpop.permute.xlu0 %507
        %vm509 = vcmask 924672
        %v510 = vsel %vm509, %v506, %v508
        %v514 = vmul.f32 %v491, %v506
        %v515 = vmul.f32 %v492, %v510
        %v516 = vmul.f32 %v493, %v508
        %520 = vrot.lane.b32.xlu0 %v514, 15
        %v521 = vpop.permute.xlu0 %520
        %522 = vrot.lane.b32.xlu0 %v515, 15
        %v523 = vpop.permute.xlu0 %522
        %524 = vrot.lane.b32.xlu0 %v516, 15
        %v525 = vpop.permute.xlu0 %524
        %vm526 = vcmask 121856
        %v527 = vsel %vm526, %v521, %v523
        %v528 = vsel %vm526, %v523, %v525
        %531 = vst [vmem:[#allocation3 + $0x20] sm:$0xff] %v527
        %532 = vst [vmem:[#allocation3 + $0x28] sm:$0xff] %v528
        %v533 = vld [vmem:[#allocation2] sm:$0xff]
        %v534 = vld [vmem:[#allocation2 + $0x8] sm:$0xff]
        %v535 = vld [vmem:[#allocation2 + $0x10] sm:$0xff]
        %v536 = vld [vmem:[%s5] ss:$4 sm:$0x3]
        %v538 = vlaneseq
        %v539 = vshrl.u32 %v538, 7
        %v540 = vsub.s32 0, %v539
        %v541 = vrot.slane %v536, %v540
        %v542 = vlaneseq
        %v543 = vshrl.u32 %v542, 7
        %v544 = vsub.s32 1, %v543
        %v545 = vrot.slane %v536, %v544
        %546 = vrot.lane.b32.xlu0 %v541, 127
        %v547 = vpop.permute.xlu0 %546
        %548 = vrot.lane.b32.xlu0 %v545, 127
        %v549 = vpop.permute.xlu0 %548
        %vm550 = vcmask 1039360
        %v551 = vsel %vm550, %v547, %v549
        %v555 = vmul.f32 %v533, %v547
        %v556 = vmul.f32 %v534, %v551
        %v557 = vmul.f32 %v535, %v549
        %561 = vrot.lane.b32.xlu0 %v555, 1
        %v562 = vpop.permute.xlu0 %561
        %563 = vrot.lane.b32.xlu0 %v556, 1
        %v564 = vpop.permute.xlu0 %563
        %565 = vrot.lane.b32.xlu0 %v557, 1
        %v566 = vpop.permute.xlu0 %565
        %vm567 = vcmask 7168
        %v568 = vsel %vm567, %v562, %v564
        %v569 = vsel %vm567, %v564, %v566
        %572 = vst [vmem:[#allocation3 + $0x30] sm:$0xff] %v568
        %573 = vst [vmem:[#allocation3 + $0x38] sm:$0xff] %v569
        %v574 = vld [vmem:[#allocation2 + $0x8] sm:$0xff]
        %v575 = vld [vmem:[#allocation2 + $0x10] sm:$0xff]
        %576 = vst [vmem:[#allocation3 + $0x40] sm:$0xff] %v574
        %577 = vst [vmem:[#allocation3 + $0x48] sm:$0xff] %v575
        %v578 = vld [vmem:[#allocation2 + $0x8] sm:$0xff]
        %v579 = vld [vmem:[#allocation2 + $0x10] sm:$0xff]
        %v580 = vld [vmem:[#allocation2 + $0x18] sm:$0xff]
        %v581 = vld [vmem:[%s494] ss:$4 sm:$0x3]
        %v583 = vlaneseq
        %v584 = vshrl.u32 %v583, 7
        %v585 = vsub.s32 0, %v584
        %v586 = vrot.slane %v581, %v585
        %v587 = vlaneseq
        %v588 = vshrl.u32 %v587, 7
        %v589 = vsub.s32 1, %v588
        %v590 = vrot.slane %v581, %v589
        %591 = vrot.lane.b32.xlu0 %v586, 1
        %v592 = vpop.permute.xlu0 %591
        %593 = vrot.lane.b32.xlu0 %v590, 1
        %v594 = vpop.permute.xlu0 %593
        %v595 = vsel %vm567, %v592, %v594
        %v599 = vmul.f32 %v578, %v592
        %v600 = vmul.f32 %v579, %v595
        %v601 = vmul.f32 %v580, %v594
        %605 = vrot.lane.b32.xlu0 %v599, 127
        %v606 = vpop.permute.xlu0 %605
        %607 = vrot.lane.b32.xlu0 %v600, 127
        %v608 = vpop.permute.xlu0 %607
        %609 = vrot.lane.b32.xlu0 %v601, 127
        %v610 = vpop.permute.xlu0 %609
        %v611 = vsel %vm550, %v606, %v608
        %v612 = vsel %vm550, %v608, %v610
        %615 = vst [vmem:[#allocation3 + $0x50] sm:$0xff] %v611
        %616 = vst [vmem:[#allocation3 + $0x58] sm:$0xff] %v612
        %v617 = vld [vmem:[#allocation2 + $0x8] sm:$0xff]
        %v618 = vld [vmem:[#allocation2 + $0x10] sm:$0xff]
        %v619 = vld [vmem:[#allocation2 + $0x18] sm:$0xff]
        %v620 = vld [vmem:[%s5] ss:$4 sm:$0x3]
        %v622 = vlaneseq
        %v623 = vshrl.u32 %v622, 7
        %v624 = vsub.s32 0, %v623
        %v625 = vrot.slane %v620, %v624
        %v626 = vlaneseq
        %v627 = vshrl.u32 %v626, 7
        %v628 = vsub.s32 1, %v627
        %v629 = vrot.slane %v620, %v628
        %630 = vrot.lane.b32.xlu0 %v625, 15
        %v631 = vpop.permute.xlu0 %630
        %632 = vrot.lane.b32.xlu0 %v629, 15
        %v633 = vpop.permute.xlu0 %632
        %v634 = vsel %vm526, %v631, %v633
        %v638 = vmul.f32 %v617, %v631
        %v639 = vmul.f32 %v618, %v634
        %v640 = vmul.f32 %v619, %v633
        %644 = vrot.lane.b32.xlu0 %v638, 113
        %v645 = vpop.permute.xlu0 %644
        %646 = vrot.lane.b32.xlu0 %v639, 113
        %v647 = vpop.permute.xlu0 %646
        %648 = vrot.lane.b32.xlu0 %v640, 113
        %v649 = vpop.permute.xlu0 %648
        %v650 = vsel %vm509, %v645, %v647
        %v651 = vsel %vm509, %v647, %v649
        %654 = vst [vmem:[#allocation3 + $0x60] sm:$0xff] %v650
        %655 = vst [vmem:[#allocation3 + $0x68] sm:$0xff] %v651
        %v656 = vld [vmem:[#allocation2 + $0x8] sm:$0xff]
        %v657 = vld [vmem:[#allocation2 + $0x10] sm:$0xff]
        %v658 = vld [vmem:[#allocation2 + $0x18] sm:$0xff]
        %662 = vrot.lane.b32.xlu0 %v656, 112
        %v663 = vpop.permute.xlu0 %662
        %664 = vrot.lane.b32.xlu0 %v657, 112
        %v665 = vpop.permute.xlu0 %664
        %666 = vrot.lane.b32.xlu0 %v658, 112
        %v667 = vpop.permute.xlu0 %666
        %vm668 = vcmask 916480
        %v669 = vsel %vm668, %v663, %v665
        %v670 = vsel %vm668, %v665, %v667
        %673 = vst [vmem:[#allocation3 + $0x70] sm:$0xff] %v669
        %674 = vst [vmem:[#allocation3 + $0x78] sm:$0xff] %v670
        %v675 = vld [vmem:[#allocation2 + $0x8] sm:$0xff]
        %v676 = vld [vmem:[#allocation2 + $0x10] sm:$0xff]
        %v677 = vld [vmem:[#allocation2 + $0x18] sm:$0xff]
        %v678 = vld [vmem:[%s494] ss:$4 sm:$0x3]
        %v680 = vlaneseq
        %v681 = vshrl.u32 %v680, 7
        %v682 = vsub.s32 0, %v681
        %v683 = vrot.slane %v678, %v682
        %v684 = vlaneseq
        %v685 = vshrl.u32 %v684, 7
        %v686 = vsub.s32 1, %v685
        %v687 = vrot.slane %v678, %v686
        %688 = vrot.lane.b32.xlu0 %v683, 17
        %v689 = vpop.permute.xlu0 %688
        %690 = vrot.lane.b32.xlu0 %v687, 17
        %v691 = vpop.permute.xlu0 %690
        %v692 = vsel %vm330, %v689, %v691
        %v696 = vmul.f32 %v675, %v689
        %v697 = vmul.f32 %v676, %v692
        %v698 = vmul.f32 %v677, %v691
        %702 = vrot.lane.b32.xlu0 %v696, 111
        %v703 = vpop.permute.xlu0 %702
        %704 = vrot.lane.b32.xlu0 %v697, 111
        %v705 = vpop.permute.xlu0 %704
        %706 = vrot.lane.b32.xlu0 %v698, 111
        %v707 = vpop.permute.xlu0 %706
        %v708 = vsel %vm449, %v703, %v705
        %v709 = vsel %vm449, %v705, %v707
        %712 = vst [vmem:[#allocation3 + $0x80] sm:$0xff] %v708
        %713 = vst [vmem:[#allocation3 + $0x88] sm:$0xff] %v709
      $region48: #{up_module_forward.1} parent=43 // pred_fallthru
        _
      %v714 = vld [vmem:[%s315] sm:$0xff]
      %v715 = vld [vmem:[%s311] sm:$0xff]
      %v716 = vld [vmem:[#allocation3] sm:$0xff]
      %v717 = vld [vmem:[#allocation3 + $0x8] sm:$0xff]
      %v718 = vld [vmem:[#allocation3 + $0x10] sm:$0xff]
      %v719 = vld [vmem:[#allocation3 + $0x18] sm:$0xff]
      %v720 = vld [vmem:[#allocation3 + $0x20] sm:$0xff]
      %v721 = vld [vmem:[#allocation3 + $0x28] sm:$0xff]
      %v722 = vld [vmem:[#allocation3 + $0x30] sm:$0xff]
      %v723 = vld [vmem:[#allocation3 + $0x38] sm:$0xff]
      %v724 = vld [vmem:[#allocation3 + $0x40] sm:$0xff]
      %v725 = vld [vmem:[#allocation3 + $0x48] sm:$0xff]
      %v726 = vld [vmem:[#allocation3 + $0x50] sm:$0xff]
      %v727 = vld [vmem:[#allocation3 + $0x58] sm:$0xff]
      %v728 = vld [vmem:[#allocation3 + $0x60] sm:$0xff]
      %v729 = vld [vmem:[#allocation3 + $0x68] sm:$0xff]
      %v730 = vld [vmem:[#allocation3 + $0x70] sm:$0xff]
      %v731 = vld [vmem:[#allocation3 + $0x78] sm:$0xff]
      %v732 = vld [vmem:[#allocation3 + $0x80] sm:$0xff]
      %v733 = vld [vmem:[#allocation3 + $0x88] sm:$0xff]
      %735 = vset.pattern.permute.xlu0 0
      %736 = vperm.xlu0 %735, %v714
      %v737 = vpop.permute.xlu0 %736
      %vm739 = vcmask 588800
      %v741 = vsel %vm739, %v715, 0
      %743 = vmatprep.subr.mxu0 %v717
      %744 = vmatpush1.msra.mxu0 %v716
      %745 = vmatprep.subr.mxu0 %v719
      %746 = vmatpush1.msra.mxu0 %v718
      %747 = vmatprep.subr.mxu0 %v721
      %748 = vmatpush1.msra.mxu0 %v720
      %749 = vmatprep.subr.mxu0 %v723
      %750 = vmatpush1.msra.mxu0 %v722
      %751 = vmatprep.subr.mxu0 %v725
      %752 = vmatpush1.msra.mxu0 %v724
      %753 = vmatprep.subr.mxu0 %v727
      %754 = vmatpush1.msra.mxu0 %v726
      %755 = vmatprep.subr.mxu0 %v729
      %756 = vmatpush1.msra.mxu0 %v728
      %757 = vmatprep.subr.mxu0 %v731
      %758 = vmatpush1.msra.mxu0 %v730
      %759 = vmatprep.subr.mxu0 %v733
      %760 = vmatpush1.msra.mxu0 %v732
      %761 = vmatprep.subr.mxu0 0.0
      %762 = vmatpush1.msra.mxu0 0.0
      %763 = vmatprep.subr.mxu0 0.0
      %764 = vmatpush1.msra.mxu0 0.0
      %765 = vmatprep.subr.mxu0 0.0
      %766 = vmatpush1.msra.mxu0 0.0
      %767 = vmatprep.subr.mxu0 0.0
      %768 = vmatpush1.msra.mxu0 0.0
      %769 = vmatprep.subr.mxu0 0.0
      %770 = vmatpush1.msra.mxu0 0.0
      %771 = vmatprep.subr.mxu0 0.0
      %772 = vmatpush1.msra.mxu0 0.0
      %773 = vmatprep.subr.mxu0 0.0
      %774 = vmatpush1.msra.mxu0 0.0
      %775 = vmatprep.subr.mxu0 0.0
      %776 = vmatpush1.msra.mxu0 0.0
      %777 = vmatprep.subr.mxu0 0.0
      %778 = vmatpush1.msra.mxu0 0.0
      %779 = vmatprep.subr.mxu0 0.0
      %780 = vmatpush1.msra.mxu0 0.0
      %781 = vmatprep.subr.mxu0 0.0
      %782 = vmatpush1.msra.mxu0 0.0
      %783 = vmatprep.subr.mxu0 0.0
      %784 = vmatpush1.msra.mxu0 0.0
      %785 = vmatprep.subr.mxu0 0.0
      %786 = vmatpush1.msra.mxu0 0.0
      %787 = vmatprep.subr.mxu0 0.0
      %788 = vmatpush1.msra.mxu0 0.0
      %789 = vmatprep.subr.mxu0 0.0
      %790 = vmatpush1.msra.mxu0 0.0
      %791 = vmatprep.subr.mxu0 0.0
      %792 = vmatpush1.msra.mxu0 0.0
      %793 = vmatprep.subr.mxu0 0.0
      %794 = vmatpush1.msra.mxu0 0.0
      %795 = vmatprep.subr.mxu0 0.0
      %796 = vmatpush1.msra.mxu0 0.0
      %797 = vmatprep.subr.mxu0 0.0
      %798 = vmatpush1.msra.mxu0 0.0
      %799 = vmatprep.subr.mxu0 0.0
      %800 = vmatpush1.msra.mxu0 0.0
      %801 = vmatprep.subr.mxu0 0.0
      %802 = vmatpush1.msra.mxu0 0.0
      %803 = vmatprep.subr.mxu0 0.0
      %804 = vmatpush1.msra.mxu0 0.0
      %805 = vmatprep.subr.mxu0 0.0
      %806 = vmatpush1.msra.mxu0 0.0
      %807 = vmatprep.mubr.f32.mxu0 0.0
      %808 = vmatmul.mubr.f32.gmra.mrb[0].mxu0 %v741
      %v809 = vpop.f32.mrb[0].mxu0
      %v810 = vadd.f32 %v737, %v809
      %v811 = vpop.f32.mrb[0].mxu0
      %v812 = vadd.f32 %v737, %v811
      %813 = vdwg.mxu0
      %v814 = vmax.f32 %v810, 0.0
      %v815 = vmax.f32 %v812, 0.0
      %816 = vst [vmem:[%s324] sm:$0xff] %v814
      %817 = vst [vmem:[%s324 + $0x8] sm:$0xff] %v815
      %p818 = scmp.lt.s32.totalorder %s21, 1
      %s819 = scalar_select %p818, %s21, 1
      %p820 = scmp.lt.s32.totalorder %s22, 1
      %s821 = scalar_select %p820, %s22, 1
      %s822 = smul.addr %s821, 2
      %s823 = smul.addr %s819, 4
      %s824 = sadd.s32 %s822, %s823
      %s825 = smul.addr %s824, 8
      %s826 = scalar_lea.vmem %s6, %s825
      // Predicated region
      $region49: #{up_module_forward.1} parent=43 // pred_check
        %p827 = pneg %p195
      $region50: #{up_module_forward.1} parent=43 // pred_check_branch
        %829 = sbr.rel (%p827) target = $region52
      $region51: #{up_module_forward.1} parent=43 // pred_region
        _
      $region52: #{up_module_forward.1} parent=43 // pred_fallthru
        _
    $region44: #{up_module_forward.1} parent=5 // pred_fallthru
      _
    %p830 = scmp.le.s32.totalorder 2, %s12
    // Predicated region
    $region53: #{up_module_forward.1} parent=5 // pred_check
      %p831 = pneg %p830
    $region54: #{up_module_forward.1} parent=5 // pred_check_branch
      %833 = sbr.rel (%p831) target = $region56
    $region55: #{up_module_forward.1} parent=5 // pred_region
      %s834 = ssub.s32 %s12, 2
      // Predicated region
      $region57: #{up_module_forward.1} parent=55 // pred_check
        %p835 = pneg %p201
      $region58: #{up_module_forward.1} parent=55 // pred_check_branch
        %837 = sbr.rel (%p835) target = $region60
      $region59: #{up_module_forward.1} parent=55 // pred_region
        %p838 = scmp.lt.s32.totalorder %s23, 1
        %s839 = scalar_select %p838, %s23, 1
        %p840 = scmp.lt.s32.totalorder %s24, 1
        %s841 = scalar_select %p840, %s24, 1
        %s842 = smul.addr %s841, 2
        %s843 = smul.addr %s839, 4
        %s844 = sadd.s32 %s842, %s843
        %s845 = smul.addr %s844, 8
        %s846 = scalar_lea.vmem %s6, %s845
      $region60: #{up_module_forward.1} parent=55 // pred_fallthru
        _
    $region56: #{up_module_forward.1} parent=5 // pred_fallthru
      _
  $region6: #{up_module_forward.1} parent=0 // loop_footer
    %s16 = sadd.s32 1, %s12
  $region7: #{up_module_forward.1} parent=0 // loop_footer_branch
    %11 = sbr.rel target = $region3
  $region8: #{up_module_forward.1} parent=0 // loop_exit
    _

</llo_original>
